<compile_context>
chip_gen: v6e
topology: v6e:2x2x1
jax: 0.10.0
libtpu: 0.0.40
codegen_flags: <defaults>
</compile_context>

<pallas_src>
import functools

import jax
import jax.numpy as jnp
from jax import lax
from jax.experimental import pallas as pl
from jax.experimental.pallas import tpu as pltpu

_LANE = 128
_SUBLANE = 8


def _focal_loss_kernel(logits_ref, tgt_ref, out_ref, *,
                       alpha, gamma, tile_n, n_valid):
    i = pl.program_id(0)

    logits = logits_ref[...].astype(jnp.float32)            # (tile_n, C)
    tgt = tgt_ref[...]                                       # (tile_n, 1) int32

    # cross_entropy(reduction='none') per row.  The row max cancels between
    # logsumexp(logits) and logits[target], so only shifted values are needed.
    m = jnp.max(logits, axis=-1, keepdims=True)
    shifted = logits - m
    lse_shifted = jnp.log(jnp.sum(jnp.exp(shifted), axis=-1, keepdims=True))

    cols = lax.broadcasted_iota(jnp.int32, logits.shape, 1)
    # NOTE: out-of-range / negative targets are not checked (PyTorch would
    # raise); only valid class indices are supported.  ignore_index unsupported.
    tgt_shifted = jnp.sum(jnp.where(cols == tgt, shifted, 0.0),
                          axis=-1, keepdims=True)

    ce = lse_shifted - tgt_shifted                           # (tile_n, 1)
    pt = jnp.exp(-ce)
    # Clamp: pt can exceed 1 by a ulp and x**gamma lowers to exp(gamma*log(x)),
    # which would produce NaN for a slightly negative base.
    one_minus_pt = jnp.maximum(1.0 - pt, 0.0)
    if float(gamma) == 2.0:
        focal_w = one_minus_pt * one_minus_pt
    elif float(gamma) == 1.0:
        focal_w = one_minus_pt
    elif float(gamma) == 0.0:
        focal_w = jnp.ones_like(one_minus_pt)
    else:
        focal_w = one_minus_pt ** gamma
    f_loss = alpha * focal_w * ce                            # (tile_n, 1)

    # Zero out rows past the logical end of the batch: the last block may be
    # partial and its out-of-bounds rows hold unspecified data.  This select
    # MUST stay after all the row-wise math above so garbage/NaN rows never
    # reach the partial sum.
    row = lax.broadcasted_iota(jnp.int32, (tile_n, 1), 0) + i * tile_n
    f_loss = jnp.where(row < n_valid, f_loss, 0.0)

    # Per-tile partial sum, broadcast into this step's own (8,128)-aligned,
    # lane-dense output block (no carried state -> grid stays fully parallel).
    partial = jnp.sum(f_loss)
    out_ref[...] = jnp.zeros((8, 128), jnp.float32) + partial


def _block_bytes_per_row(c, itemsize):
    """Actual VMEM bytes per tile row (lane-padded logits + lane-padded targets)."""
    c_pad = ((c + _LANE - 1) // _LANE) * _LANE
    logits_row = c_pad * itemsize
    tgt_row = _LANE * 4          # (tile_n, 1) int32 block pads to 128 lanes
    return logits_row, tgt_row


def _choose_tile_n(n, c, itemsize):
    """Row tile: multiple of 8, (logits + targets) block bounded by a budget that
    amortizes the ~0.35 us/step overhead even at v7x HBM bandwidth while staying
    small against every generation's VMEM once double-buffered."""
    logits_row, tgt_row = _block_bytes_per_row(c, itemsize)
    row_bytes = logits_row + tgt_row
    try:
        vmem_cap = int(pltpu.get_tpu_info().vmem_capacity_bytes)
    except Exception:               # info unavailable (e.g. interpret mode)
        vmem_cap = 64 << 20         # v7x per-TC VMEM, the smallest generation
    block_budget = int(min(6 << 20, max(2 << 20, vmem_cap // 10)))
    t = block_budget // row_bytes
    t = int(max(_SUBLANE, min(t, 16384)))
    t = (t // _SUBLANE) * _SUBLANE
    n_pad8 = ((n + _SUBLANE - 1) // _SUBLANE) * _SUBLANE
    return max(_SUBLANE, min(t, n_pad8))


def focal_loss(logits, targets, *, alpha=1.0, gamma=2.0, reduction="mean",
               tile_n=None):
    """Focal loss matching the PyTorch FocalLoss.forward ('mean' / 'sum')."""
    n, c = logits.shape
    itemsize = jnp.dtype(logits.dtype).itemsize
    if tile_n is None:
        tile_n = _choose_tile_n(n, c, itemsize)
    tile_n = max(_SUBLANE, (int(tile_n) // _SUBLANE) * _SUBLANE)

    # No padding of the logits (that would cost a full extra HBM pass): the grid
    # covers ceil(n / tile_n) blocks and the kernel masks rows >= n in the
    # partial last block.  Targets are likewise streamed unpadded.
    num_tiles = pl.cdiv(n, tile_n)
    targets_2d = targets.astype(jnp.int32).reshape(n, 1)

    # Explicit scoped-VMEM limit: 2 pipeline buffers per input stream + the
    # tiny output block, with generous margin.  Always <= 48 MiB, which is
    # within physical VMEM on v5e/v6e (128 MiB) and v7x (64 MiB), and lifts
    # v5e's 16 MiB scoped default out of the way.
    logits_row, tgt_row = _block_bytes_per_row(c, itemsize)
    block_bytes = tile_n * (logits_row + tgt_row)
    required = 2 * block_bytes + 2 * (8 * 128 * 4)
    vmem_limit = int(min(48 << 20, max(32 << 20, 2 * required)))

    kernel = functools.partial(_focal_loss_kernel, alpha=float(alpha),
                               gamma=float(gamma), tile_n=tile_n, n_valid=n)

    out = pl.pallas_call(
        kernel,
        out_shape=jax.ShapeDtypeStruct((num_tiles * 8, 128), jnp.float32),
        grid_spec=pltpu.PrefetchScalarGridSpec(
            num_scalar_prefetch=0,
            grid=(num_tiles,),
            in_specs=[
                pl.BlockSpec((tile_n, c), lambda i: (i, 0)),   # logits tile
                pl.BlockSpec((tile_n, 1), lambda i: (i, 0)),   # target idx tile
            ],
            out_specs=pl.BlockSpec((8, 128), lambda i: (i, 0)),  # per-tile partial
        ),
        compiler_params=pltpu.CompilerParams(
            dimension_semantics=("parallel",),
            vmem_limit_bytes=vmem_limit),
    )(logits, targets_2d)

    partials = out.reshape(num_tiles, 8, 128)[:, 0, 0]
    total = jnp.sum(partials)
    if reduction == "sum":
        return total
    if reduction == "mean":
        return total / jnp.float32(n)
    # TODO(synk): reduction='none' (per-row focal loss output) not implemented.
    raise NotImplementedError("reduction must be 'mean' or 'sum'")


def _focal_loss_ref(logits, targets, alpha=1.0, gamma=2.0, reduction="mean"):
    logits = logits.astype(jnp.float32)
    lse = jax.nn.logsumexp(logits, axis=-1)
    tgt_logit = jnp.take_along_axis(logits, targets[:, None].astype(jnp.int32),
                                    axis=-1)[:, 0]
    ce = lse - tgt_logit
    pt = jnp.exp(-ce)
    f = alpha * (1.0 - pt) ** gamma * ce
    return jnp.sum(f) if reduction == "sum" else jnp.mean(f)


if __name__ == "__main__":
    key = jax.random.PRNGKey(0)
    k1, k2, k3, k4 = jax.random.split(key, 4)

    # Case 1: f32 logits, N a multiple of 8, default alpha/gamma, 'mean'.
    n1, c1 = 32, 16
    logits1 = jax.random.normal(k1, (n1, c1), dtype=jnp.float32)
    targets1 = jax.random.randint(k2, (n1,), 0, c1, dtype=jnp.int32)
    out1 = jax.block_until_ready(focal_loss(logits1, targets1, alpha=1.0, gamma=2.0))
    ref1 = _focal_loss_ref(logits1, targets1, alpha=1.0, gamma=2.0)
    assert jnp.allclose(out1, ref1, atol=1e-5, rtol=1e-5), (out1, ref1)

    # Case 1b: non-special gamma (exercises the clamped pow path) + 'sum'.
    out1b = jax.block_until_ready(
        focal_loss(logits1, targets1, alpha=0.5, gamma=1.5, reduction="sum"))
    ref1b = _focal_loss_ref(logits1, targets1, alpha=0.5, gamma=1.5,
                            reduction="sum")
    assert jnp.allclose(out1b, ref1b, atol=1e-4, rtol=1e-5), (out1b, ref1b)

    # Case 2: ragged N (exercises the unpadded partial last block) with bf16.
    n2, c2 = 50, 10
    logits2 = jax.random.normal(k3, (n2, c2), dtype=jnp.float32).astype(jnp.bfloat16)
    targets2 = jax.random.randint(k4, (n2,), 0, c2, dtype=jnp.int32)
    out2 = jax.block_until_ready(focal_loss(logits2, targets2, alpha=0.25, gamma=2.0))
    ref2 = _focal_loss_ref(logits2, targets2, alpha=0.25, gamma=2.0)
    assert jnp.allclose(out2, ref2, atol=1e-4, rtol=1e-4), (out2, ref2)

    print("KERNEL_OK")
</pallas_src>

<mosaic_0001>
module attributes {stable_mosaic.version = 11 : i64} {
  func.func @_focal_loss_kernel(%arg0: i32, %arg1: memref<32x16xf32, #tpu.memory_space<vmem>>, %arg2: memref<32x1xi32, #tpu.memory_space<vmem>>, %arg3: memref<8x128xf32, #tpu.memory_space<vmem>>) attributes {dimension_semantics = [#tpu.dimension_semantics<parallel>], iteration_bounds = array<i64: 1>, scalar_prefetch = 0 : i64, scratch_operands = 0 : i64, tpu.core_type = #tpu.core_type<tc>, window_params = [{transform_indices = @transform_0, window_bounds = array<i64: 32, 16>}, {transform_indices = @transform_1, window_bounds = array<i64: 32, 1>}, {transform_indices = @transform_2, window_bounds = array<i64: 8, 128>}]} {
    %c0 = arith.constant 0 : index
    %c0_0 = arith.constant 0 : index
    %0 = vector.load %arg1[%c0, %c0_0] : memref<32x16xf32, #tpu.memory_space<vmem>>, vector<32x16xf32>
    %c0_1 = arith.constant 0 : index
    %c0_2 = arith.constant 0 : index
    %1 = vector.load %arg2[%c0_1, %c0_2] : memref<32x1xi32, #tpu.memory_space<vmem>>, vector<32x1xi32>
    %cst = arith.constant dense<0xFF800000> : vector<32xf32>
    %2 = vector.multi_reduction <maximumf>, %0, %cst [1] : vector<32x16xf32> to vector<32xf32>
    %3 = vector.shape_cast %2 : vector<32xf32> to vector<32x1xf32>
    %4 = vector.broadcast %3 : vector<32x1xf32> to vector<32x16xf32>
    %5 = arith.subf %0, %4 : vector<32x16xf32>
    %6 = math.exp %5 : vector<32x16xf32>
    %cst_3 = arith.constant dense<0.000000e+00> : vector<32xf32>
    %7 = vector.multi_reduction <add>, %6, %cst_3 [1] : vector<32x16xf32> to vector<32xf32>
    %8 = vector.shape_cast %7 : vector<32xf32> to vector<32x1xf32>
    %9 = math.log %8 : vector<32x1xf32>
    %10 = tpu.iota {dimensions = array<i32: 1>} : vector<32x16xi32>
    %11 = vector.broadcast %1 : vector<32x1xi32> to vector<32x16xi32>
    %12 = arith.cmpi eq, %10, %11 : vector<32x16xi32>
    %cst_4 = arith.constant 0.000000e+00 : f32
    %13 = vector.broadcast %cst_4 : f32 to vector<32x16xf32>
    %14 = arith.select %12, %5, %13 : vector<32x16xi1>, vector<32x16xf32>
    %cst_5 = arith.constant dense<0.000000e+00> : vector<32xf32>
    %15 = vector.multi_reduction <add>, %14, %cst_5 [1] : vector<32x16xf32> to vector<32xf32>
    %16 = vector.shape_cast %15 : vector<32xf32> to vector<32x1xf32>
    %17 = arith.subf %9, %16 : vector<32x1xf32>
    %cst_6 = arith.constant 0.000000e+00 : f32
    %18 = vector.broadcast %cst_6 : f32 to vector<32x1xf32>
    %19 = arith.subf %18, %17 : vector<32x1xf32>
    %20 = math.exp %19 : vector<32x1xf32>
    %cst_7 = arith.constant 1.000000e+00 : f32
    %21 = vector.broadcast %cst_7 : f32 to vector<32x1xf32>
    %22 = arith.subf %21, %20 : vector<32x1xf32>
    %cst_8 = arith.constant 0.000000e+00 : f32
    %23 = vector.broadcast %cst_8 : f32 to vector<32x1xf32>
    %24 = arith.maximumf %22, %23 : vector<32x1xf32>
    %25 = arith.mulf %24, %24 : vector<32x1xf32>
    %cst_9 = arith.constant 1.000000e+00 : f32
    %26 = vector.broadcast %cst_9 : f32 to vector<32x1xf32>
    %27 = arith.mulf %26, %25 : vector<32x1xf32>
    %28 = arith.mulf %27, %17 : vector<32x1xf32>
    %29 = tpu.iota {dimensions = array<i32: 0>} : vector<32x1xi32>
    %c32_i32 = arith.constant 32 : i32
    %30 = arith.muli %arg0, %c32_i32 : i32
    %31 = vector.broadcast %30 : i32 to vector<32x1xi32>
    %32 = arith.addi %29, %31 : vector<32x1xi32>
    %c32_i32_10 = arith.constant 32 : i32
    %33 = vector.broadcast %c32_i32_10 : i32 to vector<32x1xi32>
    %34 = arith.cmpi slt, %32, %33 : vector<32x1xi32>
    %cst_11 = arith.constant 0.000000e+00 : f32
    %35 = vector.broadcast %cst_11 : f32 to vector<32x1xf32>
    %36 = arith.select %34, %28, %35 : vector<32x1xi1>, vector<32x1xf32>
    %37 = vector.shape_cast %36 : vector<32x1xf32> to vector<1x32x1xf32>
    %cst_12 = arith.constant dense<0.000000e+00> : vector<1xf32>
    %38 = vector.multi_reduction <add>, %37, %cst_12 [1, 2] : vector<1x32x1xf32> to vector<1xf32>
    %39 = vector.shape_cast %38 : vector<1xf32> to vector<1x1x1xf32>
    %40 = vector.extract %39[0, 0, 0] : f32 from vector<1x1x1xf32>
    %cst_13 = arith.constant 0.000000e+00 : f32
    %41 = vector.broadcast %cst_13 : f32 to vector<8x128xf32>
    %42 = vector.broadcast %40 : f32 to vector<8x128xf32>
    %43 = arith.addf %41, %42 : vector<8x128xf32>
    %c0_14 = arith.constant 0 : index
    %c0_15 = arith.constant 0 : index
    %44 = vector.load %arg3[%c0_14, %c0_15] : memref<8x128xf32, #tpu.memory_space<vmem>>, vector<8x128xf32>
    tpu.vector_store %arg3[%c0_14, %c0_15], %43 {strides = array<i32>} : memref<8x128xf32, #tpu.memory_space<vmem>>, vector<8x128xf32>,
    return
  }
  func.func @transform_0(%arg0: i32) -> (i32, i32) {
    %c0_i32 = arith.constant 0 : i32
    %c0_i32_0 = arith.constant 0 : i32
    return %arg0, %c0_i32 : i32, i32
  }
  func.func @transform_1(%arg0: i32) -> (i32, i32) {
    %c0_i32 = arith.constant 0 : i32
    %c0_i32_0 = arith.constant 0 : i32
    return %arg0, %c0_i32 : i32, i32
  }
  func.func @transform_2(%arg0: i32) -> (i32, i32) {
    %c0_i32 = arith.constant 0 : i32
    %c0_i32_0 = arith.constant 0 : i32
    return %arg0, %c0_i32 : i32, i32
  }
}

</mosaic_0001>

<llo_original>
// kernel: tpu_custom_call.1
$region0: #{tpu_custom_call.1}
  #allocation0 [shape = 'u32[]', space=smem, size = 0x4, offset = 0x4, fixed_abs, tag = 'smem constant byte address 0x4 - core index']
  #allocation1 [shape = 'u32[144,128]{1,0:T(1,128)}', space=vmem, size = 0x12000, scoped, tag = 'internal scratch']
  %s0 = inlined_call_operand.vmem [shape: f32[32,16], index: 0, kind: input, shape index: {}]
  %s1 = inlined_call_operand.vmem [shape: s32[32,1], index: 1, kind: input, shape index: {}]
  %s2 = inlined_call_operand.hbm [shape: f32[8,128], index: 2, kind: output, shape index: {}]
  %s3 = sld [smem:[#allocation0]]
  $region18: #{tpu_custom_call.1} parent=0
    _
  %s5 = ssub.s32 1, %s3
  %s6 = scalar_select 0, %s5, %s3
  $region1: #{tpu_custom_call.1} parent=0
    #allocation2 [shape = 'u8[4096]{0}', space=vmem, size = 0x1000, scoped, tag = 'output window, operand 0, single buffered']
    #allocation3 [shape = 's32[1]{0}', space=sflag, size = 0x4, scoped, tag = 'scoped memory for tpu_custom_call.1']
    %7 = vsyncpa [#allocation3], 0
    // Predicated region
    $region2: #{tpu_custom_call.1} parent=1 // pred_check
      _
    $region3: #{tpu_custom_call.1} parent=1 // pred_check_branch
      %9 = sbr.rel (0) target = $region5
    $region4: #{tpu_custom_call.1} parent=1 // pred_region
      _
    $region5: #{tpu_custom_call.1} parent=1 // pred_fallthru
      _
    // Predicated region
    $region6: #{tpu_custom_call.1} parent=1 // pred_check
      _
    $region7: #{tpu_custom_call.1} parent=1 // pred_check_branch
      %11 = sbr.rel (0) target = $region9
    $region8: #{tpu_custom_call.1} parent=1 // pred_region
      _
    $region9: #{tpu_custom_call.1} parent=1 // pred_fallthru
      _
    %v12 = vld [vmem:[%s0] sm:$0xff]
    %v13 = vld [vmem:[%s0 + $0x8] sm:$0xff]
    %v14 = vld [vmem:[%s0 + $0x10] sm:$0xff]
    %v15 = vld [vmem:[%s0 + $0x18] sm:$0xff]
    %v16 = vld [vmem:[%s1] sm:$0xff]
    %v17 = vld [vmem:[%s1 + $0x8] sm:$0xff]
    %v18 = vld [vmem:[%s1 + $0x10] sm:$0xff]
    %v19 = vld [vmem:[%s1 + $0x18] sm:$0xff]
    %vm20 = vcmask 130048
    %v21 = vsel %vm20, %v12, -inf
    %22 = vmax.xlane.f32.xlu0 %v21
    %v23 = vpop.xlane.xlu0 %22
    %v24 = vsel %vm20, %v13, -inf
    %25 = vmax.xlane.f32.xlu0 %v24
    %v26 = vpop.xlane.xlu0 %25
    %v27 = vsel %vm20, %v14, -inf
    %28 = vmax.xlane.f32.xlu0 %v27
    %v29 = vpop.xlane.xlu0 %28
    %v30 = vsel %vm20, %v15, -inf
    %31 = vmax.xlane.f32.xlu0 %v30
    %v32 = vpop.xlane.xlu0 %31
    %v33 = vsub.f32 %v12, %v23
    %v34 = vsub.f32 %v13, %v26
    %v35 = vsub.f32 %v14, %v29
    %v36 = vsub.f32 %v15, %v32
    %v37 = vmul.f32 %v33, 1.442695
    %v38 = vpow.pop %v37
    %v39 = vmul.f32 %v34, 1.442695
    %v40 = vpow.pop %v39
    %v41 = vmul.f32 %v35, 1.442695
    %v42 = vpow.pop %v41
    %v43 = vmul.f32 %v36, 1.442695
    %v44 = vpow.pop %v43
    %v45 = vsel %vm20, %v38, 0.0
    %46 = vadd.xlane.f32.xlu0 %v45
    %v47 = vpop.xlane.xlu0 %46
    %v48 = vsel %vm20, %v40, 0.0
    %49 = vadd.xlane.f32.xlu0 %v48
    %v50 = vpop.xlane.xlu0 %49
    %v51 = vsel %vm20, %v42, 0.0
    %52 = vadd.xlane.f32.xlu0 %v51
    %v53 = vpop.xlane.xlu0 %52
    %v54 = vsel %vm20, %v44, 0.0
    %55 = vadd.xlane.f32.xlu0 %v54
    %v56 = vpop.xlane.xlu0 %55
    %v57 = vlog2.pop %v47
    %v58 = vmul.f32 %v57, 0.6931472
    %v59 = vlog2.pop %v50
    %v60 = vmul.f32 %v59, 0.6931472
    %v61 = vlog2.pop %v53
    %v62 = vmul.f32 %v61, 0.6931472
    %v63 = vlog2.pop %v56
    %v64 = vmul.f32 %v63, 0.6931472
    %v65 = vlaneseq
    %v66 = vand.u32 %v65, 127
    %67 = vset.pattern.permute.xlu0 0
    %68 = vperm.xlu0 %67, %v16
    %v69 = vpop.permute.xlu0 %68
    %70 = vset.pattern.permute.xlu0 0
    %71 = vperm.xlu0 %70, %v17
    %v72 = vpop.permute.xlu0 %71
    %73 = vset.pattern.permute.xlu0 0
    %74 = vperm.xlu0 %73, %v18
    %v75 = vpop.permute.xlu0 %74
    %76 = vset.pattern.permute.xlu0 0
    %77 = vperm.xlu0 %76, %v19
    %v78 = vpop.permute.xlu0 %77
    %vm79 = vcmp.eq.s32.totalorder %v66, %v69
    %vm80 = vcmp.eq.s32.totalorder %v66, %v72
    %vm81 = vcmp.eq.s32.totalorder %v66, %v75
    %vm82 = vcmp.eq.s32.totalorder %v66, %v78
    %v83 = vsel %vm79, %v33, 0.0
    %v84 = vsel %vm80, %v34, 0.0
    %v85 = vsel %vm81, %v35, 0.0
    %v86 = vsel %vm82, %v36, 0.0
    %v87 = vsel %vm20, %v83, 0.0
    %88 = vadd.xlane.f32.xlu0 %v87
    %v89 = vpop.xlane.xlu0 %88
    %v90 = vsel %vm20, %v84, 0.0
    %91 = vadd.xlane.f32.xlu0 %v90
    %v92 = vpop.xlane.xlu0 %91
    %v93 = vsel %vm20, %v85, 0.0
    %94 = vadd.xlane.f32.xlu0 %v93
    %v95 = vpop.xlane.xlu0 %94
    %v96 = vsel %vm20, %v86, 0.0
    %97 = vadd.xlane.f32.xlu0 %v96
    %v98 = vpop.xlane.xlu0 %97
    %v99 = vsub.f32 %v58, %v89
    %v100 = vsub.f32 %v60, %v92
    %v101 = vsub.f32 %v62, %v95
    %v102 = vsub.f32 %v64, %v98
    %v103 = vsub.f32 0.0, %v99
    %v104 = vsub.f32 0.0, %v100
    %v105 = vsub.f32 0.0, %v101
    %v106 = vsub.f32 0.0, %v102
    %v107 = vmul.f32 %v103, 1.442695
    %v108 = vpow.pop %v107
    %v109 = vmul.f32 %v104, 1.442695
    %v110 = vpow.pop %v109
    %v111 = vmul.f32 %v105, 1.442695
    %v112 = vpow.pop %v111
    %v113 = vmul.f32 %v106, 1.442695
    %v114 = vpow.pop %v113
    %v115 = vsub.f32 1.0, %v108
    %v116 = vsub.f32 1.0, %v110
    %v117 = vsub.f32 1.0, %v112
    %v118 = vsub.f32 1.0, %v114
    %v119 = vmax.f32 %v115, 0.0
    %v120 = vmax.f32 %v116, 0.0
    %v121 = vmax.f32 %v117, 0.0
    %v122 = vmax.f32 %v118, 0.0
    %v123 = vmul.f32 %v119, %v119
    %v124 = vmul.f32 %v120, %v120
    %v125 = vmul.f32 %v121, %v121
    %v126 = vmul.f32 %v122, %v122
    %v127 = vmul.f32 %v123, %v99
    %v128 = vmul.f32 %v124, %v100
    %v129 = vmul.f32 %v125, %v101
    %v130 = vmul.f32 %v126, %v102
    %v131 = vlaneseq
    %v132 = vshrl.u32 %v131, 7
    %v133 = vadd.s32 %v132, 8
    %v134 = vadd.s32 %v132, 16
    %v135 = vadd.s32 %v132, 24
    %s136 = smul.u32 0, 32
    %v137 = vstv %s136
    %v138 = vadd.s32 %v132, %v137
    %v139 = vadd.s32 %v133, %v137
    %v140 = vadd.s32 %v134, %v137
    %v141 = vadd.s32 %v135, %v137
    %vm142 = vcmp.lt.s32.totalorder %v138, 32
    %vm143 = vcmp.lt.s32.totalorder %v139, 32
    %vm144 = vcmp.lt.s32.totalorder %v140, 32
    %vm145 = vcmp.lt.s32.totalorder %v141, 32
    %v146 = vsel %vm142, %v127, 0.0
    %v147 = vsel %vm143, %v128, 0.0
    %v148 = vsel %vm144, %v129, 0.0
    %v149 = vsel %vm145, %v130, 0.0
    %vm150 = vcmask 7168
    %v151 = vsel %vm150, %v146, 0.0
    %v152 = vsel %vm150, %v147, 0.0
    %v153 = vadd.f32 %v151, %v152
    %v154 = vsel %vm150, %v148, 0.0
    %v155 = vadd.f32 %v153, %v154
    %v156 = vsel %vm150, %v149, 0.0
    %v157 = vadd.f32 %v155, %v156
    %158 = vadd.xlane.f32.xlu0 %v157
    %v159 = vpop.xlane.xlu0 %158
    %v160 = vrot.slane %v159, 4
    %v161 = vadd.f32 %v159, %v160
    %v162 = vrot.slane %v161, 2
    %v163 = vadd.f32 %v161, %v162
    %v164 = vrot.slane %v163, 1
    %v165 = vadd.f32 %v163, %v164
    %s166 = vtos %v165
    %v167 = vstv %s166
    %v168 = vadd.f32 %v167, 0.0
    %169 = vst [vmem:[#allocation2] sm:$0xff] %v168
    // Predicated region
    $region10: #{tpu_custom_call.1} parent=1 // pred_check
      _
    $region11: #{tpu_custom_call.1} parent=1 // pred_check_branch
      %171 = sbr.rel (0) target = $region13
    $region12: #{tpu_custom_call.1} parent=1 // pred_region
      %s173 = ssub.s32 128, 128
      %174 = vsyncadd [#allocation3], %s173
      %s176 = sshll.u32 [#allocation2], 4
      %s177 = int_to_ptr.vmem [resolvable:$true] %s176
      %179 = dma.vmem_to_hbm [thread:$0]  %s177, 128, %s2, [#allocation3]
    $region13: #{tpu_custom_call.1} parent=1 // pred_fallthru
      _
    // Predicated region
    $region14: #{tpu_custom_call.1} parent=1 // pred_check
      _
    $region15: #{tpu_custom_call.1} parent=1 // pred_check_branch
      %181 = sbr.rel (0) target = $region17
    $region16: #{tpu_custom_call.1} parent=1 // pred_region
      %182 = dma.done [#allocation3], 128
    $region17: #{tpu_custom_call.1} parent=1 // pred_fallthru
      _
    %183 = vsyncpa [#allocation3], 1

</llo_original>
